<compile_context>
chip_gen: v7x
topology: tpu7x:2x2x1
jax: 0.10.0
libtpu: 0.0.40
codegen_flags: <defaults>
</compile_context>

<pallas_src>
import functools

import numpy as np
import jax
import jax.numpy as jnp
from jax.experimental import pallas as pl
from jax.experimental.pallas import tpu as pltpu


# ----------------------------- trace-time constants -----------------------------

def _round_up(x, m):
    return ((x + m - 1) // m) * m


def _hann_window(n_fft):
    n = np.arange(n_fft, dtype=np.float64)
    return 0.5 * (1.0 - np.cos(2.0 * np.pi * n / n_fft))          # periodic hann


def _rdft_basis(n_fft, n_freq, f_pad):
    """Fused (hann-window * [cos | sin]) real-DFT basis: (n_fft, 2*f_pad)."""
    win = _hann_window(n_fft)
    nk = (np.arange(n_fft)[:, None] * np.arange(n_freq)[None, :]) % n_fft
    ang = (2.0 * np.pi / n_fft) * nk.astype(np.float64)
    cos_b = np.cos(ang) * win[:, None]
    sin_b = np.sin(ang) * win[:, None]
    pad = ((0, 0), (0, f_pad - n_freq))
    return np.concatenate([np.pad(cos_b, pad), np.pad(sin_b, pad)],
                          axis=1).astype(np.float32)


def _mel_filterbank(n_freq, n_mels, sample_rate, f_min=0.0, f_max=None):
    """torchaudio.functional.melscale_fbanks (htk, norm=None): (n_freq, n_mels)."""
    f_max = float(sample_rate // 2) if f_max is None else float(f_max)
    all_freqs = np.linspace(0.0, sample_rate // 2, n_freq)
    hz_to_mel = lambda f: 2595.0 * np.log10(1.0 + np.asarray(f, np.float64) / 700.0)
    mel_to_hz = lambda m: 700.0 * (10.0 ** (m / 2595.0) - 1.0)
    m_pts = np.linspace(hz_to_mel(f_min), hz_to_mel(f_max), n_mels + 2)
    f_pts = mel_to_hz(m_pts)
    f_diff = f_pts[1:] - f_pts[:-1]
    slopes = f_pts[None, :] - all_freqs[:, None]
    down = (-slopes[:, :-2]) / f_diff[:-1]
    up = slopes[:, 2:] / f_diff[1:]
    return np.maximum(0.0, np.minimum(down, up)).astype(np.float32)


def _dct_matrix(n_mfcc, n_mels):
    """torchaudio.functional.create_dct(norm='ortho'): (n_mels, n_mfcc)."""
    n = np.arange(n_mels, dtype=np.float64)
    k = np.arange(n_mfcc, dtype=np.float64)[:, None]
    dct = np.cos(np.pi / n_mels * (n + 0.5) * k)                  # (n_mfcc, n_mels)
    dct[0] *= 1.0 / np.sqrt(2.0)
    dct *= np.sqrt(2.0 / n_mels)
    return dct.T.astype(np.float32)                               # (n_mels, n_mfcc)


# ----------------------------------- kernel --------------------------------------

def _mel_db_kernel(frames_ref, basis_ref, melfb_ref, out_ref):
    # frames_ref: (tm, n_fft)     bf16 raw frames (window already folded in basis)
    # basis_ref : (n_fft, 2*Fp)   bf16 fused [win*cos | win*sin] rDFT basis
    # melfb_ref : (Fp, Cp)        f32 mel filterbank (pad rows/cols are zero)
    # out_ref   : (tm, Cp)        f32 mel power spectrogram in dB
    f_pad = basis_ref.shape[1] // 2
    ri = jnp.dot(frames_ref[...], basis_ref[...],
                 preferred_element_type=jnp.float32)              # (tm, 2*Fp)
    re = ri[:, :f_pad]
    im = ri[:, f_pad:]
    power = re * re + im * im                                     # (tm, Fp)
    mel = jnp.dot(power, melfb_ref[...],
                  preferred_element_type=jnp.float32)             # (tm, Cp)
    out_ref[...] = 10.0 * jnp.log10(jnp.maximum(mel, 1e-10))


def _choose_row_tile(n_rows):
    # Big tiles fill the MXU; keep >= 2 grid steps (v7x megacore) when possible
    # and bound padding waste.
    for cand in (512, 256, 128):
        if n_rows >= 2 * cand:
            return cand
    if n_rows >= 128:
        return 128
    return max(8, _round_up(n_rows, 8))


# ----------------------------------- wrapper --------------------------------------

@functools.partial(
    jax.jit,
    static_argnames=("sample_rate", "n_mfcc", "n_fft", "n_mels", "hop_length", "top_db"))
def mfcc_mean(x, *, sample_rate=16000, n_mfcc=40, n_fft=400, n_mels=128,
              hop_length=None, top_db=80.0):
    """x: (..., time) float32 waveform -> (..., n_mfcc): mean-over-time MFCCs."""
    x = x.astype(jnp.float32)
    hop = n_fft // 2 if hop_length is None else hop_length
    pad = n_fft // 2
    n_freq = n_fft // 2 + 1

    lead = x.shape[:-1]
    T = x.shape[-1]

    # ---- glue: reflect pad + overlapping frame gather (XLA) ----
    xp = jnp.pad(x, [(0, 0)] * (x.ndim - 1) + [(pad, pad)], mode="reflect")
    n_frames = 1 + (T + 2 * pad - n_fft) // hop
    idx = jnp.arange(n_frames)[:, None] * hop + jnp.arange(n_fft)[None, :]
    frames = xp[..., idx].reshape(-1, n_fft)                      # (M, n_fft)
    M = frames.shape[0]

    tm = _choose_row_tile(M)
    Mp = _round_up(M, tm)
    Fp = _round_up(n_freq, 128)
    Cp = _round_up(n_mels, 128)

    frames = jnp.pad(frames, ((0, Mp - M), (0, 0))).astype(jnp.bfloat16)

    # ---- deterministic trace-time parameters ----
    basis = jnp.asarray(_rdft_basis(n_fft, n_freq, Fp), dtype=jnp.bfloat16)
    melfb_np = np.zeros((Fp, Cp), np.float32)
    melfb_np[:n_freq, :n_mels] = _mel_filterbank(n_freq, n_mels, sample_rate)
    melfb = jnp.asarray(melfb_np)
    dct = jnp.asarray(_dct_matrix(n_mfcc, n_mels))                # (n_mels, n_mfcc)

    # ---- Pallas hot path: windowed rDFT + power + mel projection + dB ----
    mel_db = pl.pallas_call(
        _mel_db_kernel,
        out_shape=jax.ShapeDtypeStruct((Mp, Cp), jnp.float32),
        grid=(Mp // tm,),
        in_specs=[
            pl.BlockSpec((tm, n_fft), lambda i: (i, 0)),
            pl.BlockSpec((n_fft, 2 * Fp), lambda i: (0, 0)),      # grid-invariant
            pl.BlockSpec((Fp, Cp), lambda i: (0, 0)),             # grid-invariant
        ],
        out_specs=pl.BlockSpec((tm, Cp), lambda i: (i, 0)),
        compiler_params=pltpu.CompilerParams(
            dimension_semantics=("parallel",),
            vmem_limit_bytes=48 * 1024 * 1024,                    # v7x-safe headroom
        ),
    )(frames, basis, melfb)

    # ---- glue: strip pads, top_db clamp, DCT, mean over time ----
    mel_db = mel_db[:M, :n_mels].reshape(*lead, n_frames, n_mels)
    if mel_db.ndim >= 3:
        ref_max = jnp.max(mel_db, axis=(-3, -2, -1), keepdims=True)
    else:
        ref_max = jnp.max(mel_db)
    mel_db = jnp.maximum(mel_db, ref_max - top_db)
    mfcc = mel_db @ dct                                           # (..., n_frames, n_mfcc)
    return jnp.mean(mfcc, axis=-2)                                # (..., n_mfcc)


# ---------------------------------- reference -------------------------------------

def _reference_mfcc_mean(x, *, sample_rate, n_mfcc, n_fft, n_mels,
                         hop_length=None, top_db=80.0):
    """Pure-JAX f32 reference mirroring torchaudio MFCC + mean(dim=-1)."""
    x = x.astype(jnp.float32)
    hop = n_fft // 2 if hop_length is None else hop_length
    pad = n_fft // 2
    n_freq = n_fft // 2 + 1
    xp = jnp.pad(x, [(0, 0)] * (x.ndim - 1) + [(pad, pad)], mode="reflect")
    win = jnp.asarray(_hann_window(n_fft), dtype=jnp.float32)
    n_frames = 1 + (xp.shape[-1] - n_fft) // hop
    idx = jnp.arange(n_frames)[:, None] * hop + jnp.arange(n_fft)[None, :]
    frames = xp[..., idx] * win
    power = jnp.abs(jnp.fft.rfft(frames, axis=-1)) ** 2           # (..., n_frames, n_freq)
    mel = power @ jnp.asarray(_mel_filterbank(n_freq, n_mels, sample_rate))
    db = 10.0 * jnp.log10(jnp.maximum(mel, 1e-10))
    if db.ndim >= 3:
        ref_max = jnp.max(db, axis=(-3, -2, -1), keepdims=True)
    else:
        ref_max = jnp.max(db)
    db = jnp.maximum(db, ref_max - top_db)
    mfcc = db @ jnp.asarray(_dct_matrix(n_mfcc, n_mels))
    return jnp.mean(mfcc, axis=-2)


if __name__ == "__main__":
    key = jax.random.PRNGKey(0)
    # (batch, channel, time) waveform; small but representative MFCC config.
    x = jax.random.normal(key, (2, 4, 2048), dtype=jnp.float32)
    cfg = dict(sample_rate=16000, n_mfcc=40, n_fft=256, n_mels=64)

    out = jax.block_until_ready(mfcc_mean(x, **cfg))
    assert out.shape == (2, 4, cfg["n_mfcc"]), out.shape

    ref = jax.block_until_ready(_reference_mfcc_mean(x, **cfg))
    max_err = float(jnp.max(jnp.abs(out - ref)))
    # bf16 frames/basis vs. f32 reference: dB-domain error stays well below this.
    assert max_err < 5e-1, max_err

    print("KERNEL_OK")
</pallas_src>

<mosaic_0001>
module attributes {stable_mosaic.version = 11 : i64} {
  func.func @_mel_db_kernel(%arg0: i32, %arg1: memref<128x256xbf16, #tpu.memory_space<vmem>>, %arg2: memref<256x512xbf16, #tpu.memory_space<vmem>>, %arg3: memref<256x128xf32, #tpu.memory_space<vmem>>, %arg4: memref<128x128xf32, #tpu.memory_space<vmem>>) attributes {dimension_semantics = [#tpu.dimension_semantics<parallel>], iteration_bounds = array<i64: 2>, scalar_prefetch = 0 : i64, scratch_operands = 0 : i64, tpu.core_type = #tpu.core_type<tc>, window_params = [{transform_indices = @transform_0, window_bounds = array<i64: 128, 256>}, {pipeline_mode = #tpu.pipeline_mode<synchronous>, transform_indices = @transform_1, window_bounds = array<i64: 256, 512>}, {pipeline_mode = #tpu.pipeline_mode<synchronous>, transform_indices = @transform_2, window_bounds = array<i64: 256, 128>}, {transform_indices = @transform_3, window_bounds = array<i64: 128, 128>}]} {
    %c0 = arith.constant 0 : index
    %c0_0 = arith.constant 0 : index
    %0 = vector.load %arg1[%c0, %c0_0] : memref<128x256xbf16, #tpu.memory_space<vmem>>, vector<128x256xbf16>
    %c0_1 = arith.constant 0 : index
    %c0_2 = arith.constant 0 : index
    %1 = vector.load %arg2[%c0_1, %c0_2] : memref<256x512xbf16, #tpu.memory_space<vmem>>, vector<256x512xbf16>
    %cst = arith.constant dense<0.000000e+00> : vector<128x512xf32>
    %2 = tpu.matmul %0, %1, %cst {dimension_numbers = #tpu.dot_dimension_numbers<[1], [0], [0], [1], [0, 0, 1, 1], [], []>} : vector<128x256xbf16>, vector<256x512xbf16>, vector<128x512xf32> -> vector<128x512xf32>
    %3 = vector.extract_strided_slice %2 {offsets = [0, 0], sizes = [128, 256], strides = [1, 1]} : vector<128x512xf32> to vector<128x256xf32>
    %4 = vector.extract_strided_slice %2 {offsets = [0, 256], sizes = [128, 256], strides = [1, 1]} : vector<128x512xf32> to vector<128x256xf32>
    %5 = arith.mulf %3, %3 : vector<128x256xf32>
    %6 = arith.mulf %4, %4 : vector<128x256xf32>
    %7 = arith.addf %5, %6 : vector<128x256xf32>
    %c0_3 = arith.constant 0 : index
    %c0_4 = arith.constant 0 : index
    %8 = vector.load %arg3[%c0_3, %c0_4] : memref<256x128xf32, #tpu.memory_space<vmem>>, vector<256x128xf32>
    %cst_5 = arith.constant dense<0.000000e+00> : vector<128x128xf32>
    %9 = tpu.matmul %7, %8, %cst_5 {dimension_numbers = #tpu.dot_dimension_numbers<[1], [0], [0], [1], [0, 0, 1, 1], [], []>} : vector<128x256xf32>, vector<256x128xf32>, vector<128x128xf32> -> vector<128x128xf32>
    %cst_6 = arith.constant 1.000000e-10 : f32
    %10 = vector.broadcast %cst_6 : f32 to vector<128x128xf32>
    %11 = arith.maximumf %9, %10 : vector<128x128xf32>
    %12 = math.log %11 : vector<128x128xf32>
    %cst_7 = arith.constant 0.434294492 : f32
    %13 = vector.broadcast %cst_7 : f32 to vector<128x128xf32>
    %14 = arith.mulf %12, %13 : vector<128x128xf32>
    %cst_8 = arith.constant 1.000000e+01 : f32
    %15 = vector.broadcast %cst_8 : f32 to vector<128x128xf32>
    %16 = arith.mulf %15, %14 : vector<128x128xf32>
    %c0_9 = arith.constant 0 : index
    %c0_10 = arith.constant 0 : index
    %17 = vector.load %arg4[%c0_9, %c0_10] : memref<128x128xf32, #tpu.memory_space<vmem>>, vector<128x128xf32>
    tpu.vector_store %arg4[%c0_9, %c0_10], %16 {strides = array<i32>} : memref<128x128xf32, #tpu.memory_space<vmem>>, vector<128x128xf32>,
    return
  }
  func.func @transform_0(%arg0: i32) -> (i32, i32) {
    %c0_i32 = arith.constant 0 : i32
    %c0_i32_0 = arith.constant 0 : i32
    return %arg0, %c0_i32 : i32, i32
  }
  func.func @transform_1(%arg0: i32) -> (i32, i32) {
    %c0_i32 = arith.constant 0 : i32
    %c0_i32_0 = arith.constant 0 : i32
    %c0_i32_1 = arith.constant 0 : i32
    return %c0_i32, %c0_i32_0 : i32, i32
  }
  func.func @transform_2(%arg0: i32) -> (i32, i32) {
    %c0_i32 = arith.constant 0 : i32
    %c0_i32_0 = arith.constant 0 : i32
    %c0_i32_1 = arith.constant 0 : i32
    return %c0_i32, %c0_i32_0 : i32, i32
  }
  func.func @transform_3(%arg0: i32) -> (i32, i32) {
    %c0_i32 = arith.constant 0 : i32
    %c0_i32_0 = arith.constant 0 : i32
    return %arg0, %c0_i32 : i32, i32
  }
}

</mosaic_0001>

<llo_original>
// kernel: mfcc_mean.1
$region0: #{mfcc_mean.1}
  #allocation0 [shape = 'u32[]', space=smem, size = 0x4, offset = 0x4, fixed_abs, tag = 'smem constant byte address 0x4 - core index']
  #allocation1 [shape = 'u32[144,128]{1,0:T(1,128)}', space=vmem, size = 0x12000, scoped, tag = 'internal scratch']
  %s0 = inlined_call_operand.vmem [shape: bf16[256,256], index: 0, kind: input, shape index: {}]
  %s1 = inlined_call_operand.vmem [shape: bf16[256,512], index: 1, kind: input, shape index: {}]
  %s2 = inlined_call_operand.vmem [shape: f32[256,128], index: 2, kind: input, shape index: {}]
  %s3 = inlined_call_operand.vmem [shape: f32[256,128], index: 3, kind: output, shape index: {}]
  %s4 = sld [smem:[#allocation0]]
  $region45: #{mfcc_mean.1} parent=0
    _
  %s6 = ssub.s32 1, %s4
  %s7 = scalar_select 0, %s6, %s4
  loop: start=0, step=1, limit=4
  $region2: #{mfcc_mean.1} parent=0 // loop_pre_header
    _
  $region3: #{mfcc_mean.1} parent=0 // loop_header
    %s9 = sphi 0, %s13
    %p10 = scmp.ge.s32.totalorder %s9, 4
    %s19 = sphi 0, %s21
    %s22 = sphi 0, %s19
    %s23 = sphi 0, %s22
    %s39 = sphi 0, %s23
    %s43 = sphi 0, %s43
    %s45 = sphi 0, %s43
    %s46 = sphi 0, %s45
    %s60 = sphi 0, %s46
    %s64 = sphi 0, %s64
    %s66 = sphi 0, %s64
    %s67 = sphi 0, %s66
    %s81 = sphi 0, %s67
    %s87 = sphi 0, %s89
    %s90 = sphi 0, %s87
    %s91 = sphi 0, %s90
    %s107 = sphi 0, %s91
  $region4: #{mfcc_mean.1} parent=0 // loop_header_branch
    %12 = sbr.rel (%p10) target = $region8
  $region5: #{mfcc_mean.1} parent=0 // loop_body
    %s14 = ssub.s32 %s9, 1
    %s15 = ssub.s32 %s9, 2
    %s16 = sadd.s32 %s9, 1
    %s17 = ssub.s32 %s9, %s16
    %p18 = scmp.eq.s32.totalorder %s17, 0
    %s20 = sadd.s32 %s19, 1
    %s21 = scalar_select %p18, %s19, %s20
    %p24 = pneg %p18
    %p25 = scmp.eq.s32.totalorder %s9, 1
    %p26 = por %p24, %p25
    %p27 = scmp.ne.s32.totalorder %s19, %s22
    %p28 = scmp.eq.s32.totalorder %s9, 0
    %p29 = por %p27, %p28
    %p30 = scmp.ne.s32.totalorder %s19, %s22
    %p31 = scmp.eq.s32.totalorder %s14, 1
    %p32 = por %p30, %p31
    %p33 = scmp.ne.s32.totalorder %s22, %s23
    %p34 = scmp.eq.s32.totalorder %s14, 0
    %p35 = por %p33, %p34
    %p36 = scmp.ne.s32.totalorder %s22, %s23
    %p37 = scmp.eq.s32.totalorder %s15, 1
    %p38 = por %p36, %p37
    %p40 = scmp.ne.s32.totalorder %s23, %s39
    %p41 = scmp.eq.s32.totalorder %s15, 0
    %p42 = por %p40, %p41
    %s44 = sadd.s32 %s43, 1
    %p47 = scmp.eq.s32.totalorder %s9, 1
    %p48 = scmp.ne.s32.totalorder %s43, %s45
    %p49 = scmp.eq.s32.totalorder %s9, 0
    %p50 = por %p48, %p49
    %p51 = scmp.ne.s32.totalorder %s43, %s45
    %p52 = scmp.eq.s32.totalorder %s14, 1
    %p53 = por %p51, %p52
    %p54 = scmp.ne.s32.totalorder %s45, %s46
    %p55 = scmp.eq.s32.totalorder %s14, 0
    %p56 = por %p54, %p55
    %p57 = scmp.ne.s32.totalorder %s45, %s46
    %p58 = scmp.eq.s32.totalorder %s15, 1
    %p59 = por %p57, %p58
    %p61 = scmp.ne.s32.totalorder %s46, %s60
    %p62 = scmp.eq.s32.totalorder %s15, 0
    %p63 = por %p61, %p62
    %s65 = sadd.s32 %s64, 1
    %p68 = scmp.eq.s32.totalorder %s9, 1
    %p69 = scmp.ne.s32.totalorder %s64, %s66
    %p70 = scmp.eq.s32.totalorder %s9, 0
    %p71 = por %p69, %p70
    %p72 = scmp.ne.s32.totalorder %s64, %s66
    %p73 = scmp.eq.s32.totalorder %s14, 1
    %p74 = por %p72, %p73
    %p75 = scmp.ne.s32.totalorder %s66, %s67
    %p76 = scmp.eq.s32.totalorder %s14, 0
    %p77 = por %p75, %p76
    %p78 = scmp.ne.s32.totalorder %s66, %s67
    %p79 = scmp.eq.s32.totalorder %s15, 1
    %p80 = por %p78, %p79
    %p82 = scmp.ne.s32.totalorder %s67, %s81
    %p83 = scmp.eq.s32.totalorder %s15, 0
    %p84 = por %p82, %p83
    %s85 = ssub.s32 %s9, %s16
    %p86 = scmp.eq.s32.totalorder %s85, 0
    %s88 = sadd.s32 %s87, 1
    %s89 = scalar_select %p86, %s87, %s88
    %p92 = pneg %p86
    %p93 = scmp.eq.s32.totalorder %s9, 1
    %p94 = por %p92, %p93
    %p95 = scmp.ne.s32.totalorder %s87, %s90
    %p96 = scmp.eq.s32.totalorder %s9, 0
    %p97 = por %p95, %p96
    %p98 = scmp.ne.s32.totalorder %s87, %s90
    %p99 = scmp.eq.s32.totalorder %s14, 1
    %p100 = por %p98, %p99
    %p101 = scmp.ne.s32.totalorder %s90, %s91
    %p102 = scmp.eq.s32.totalorder %s14, 0
    %p103 = por %p101, %p102
    %p104 = scmp.ne.s32.totalorder %s90, %s91
    %p105 = scmp.eq.s32.totalorder %s15, 1
    %p106 = por %p104, %p105
    %p108 = scmp.ne.s32.totalorder %s91, %s107
    %p109 = scmp.eq.s32.totalorder %s15, 0
    %p110 = por %p108, %p109
    %p111 = scmp.le.s32.totalorder 1, %s9
    %p112 = scmp.lt.s32.totalorder %s9, 3
    %p113 = pnand %p111, %p112
    %p114 = pneg %p113
    // Predicated region
    $region9: #{mfcc_mean.1} parent=5 // pred_check
      _
    $region10: #{mfcc_mean.1} parent=5 // pred_check_branch
      %116 = sbr.rel (%p113) target = $region12
    $region11: #{mfcc_mean.1} parent=5 // pred_region
      %s117 = ssub.s32 %s9, 1
      // Predicated region
      $region13: #{mfcc_mean.1} parent=11 // pred_check
        %p118 = pneg %p56
      $region14: #{mfcc_mean.1} parent=11 // pred_check_branch
        %120 = sbr.rel (%p118) target = $region16
      $region15: #{mfcc_mean.1} parent=11 // pred_region
        _
      $region16: #{mfcc_mean.1} parent=11 // pred_fallthru
        _
      // Predicated region
      $region17: #{mfcc_mean.1} parent=11 // pred_check
        %p121 = pneg %p77
      $region18: #{mfcc_mean.1} parent=11 // pred_check_branch
        %123 = sbr.rel (%p121) target = $region20
      $region19: #{mfcc_mean.1} parent=11 // pred_region
        _
      $region20: #{mfcc_mean.1} parent=11 // pred_fallthru
        _
    $region12: #{mfcc_mean.1} parent=5 // pred_fallthru
      _
    %p124 = scmp.lt.s32.totalorder %s9, 2
    // Predicated region
    $region21: #{mfcc_mean.1} parent=5 // pred_check
      %p125 = pneg %p124
    $region22: #{mfcc_mean.1} parent=5 // pred_check_branch
      %127 = sbr.rel (%p125) target = $region24
    $region23: #{mfcc_mean.1} parent=5 // pred_region
      // Predicated region
      $region25: #{mfcc_mean.1} parent=23 // pred_check
        %p128 = pneg %p29
      $region26: #{mfcc_mean.1} parent=23 // pred_check_branch
        %130 = sbr.rel (%p128) target = $region28
      $region27: #{mfcc_mean.1} parent=23 // pred_region
        %s131 = smul.u32 16, %s9
        %p132 = scmp.lt.s32.totalorder %s131, 31
        %s133 = scalar_select %p132, %s131, 31
        %s134 = smul.addr %s133, 2
        %s135 = smul.addr %s134, 4
        %s136 = scalar_lea.vmem %s0, %s135
        %s137 = smul.u32 16, %s9
      $region28: #{mfcc_mean.1} parent=23 // pred_fallthru
        _
    $region24: #{mfcc_mean.1} parent=5 // pred_fallthru
      _
    %p138 = scmp.le.s32.totalorder 1, %s9
    %p139 = scmp.lt.s32.totalorder %s9, 3
    %p140 = pnand %p138, %p139
    %p141 = pneg %p140
    // Predicated region
    $region29: #{mfcc_mean.1} parent=5 // pred_check
      _
    $region30: #{mfcc_mean.1} parent=5 // pred_check_branch
      %143 = sbr.rel (%p140) target = $region32
    $region31: #{mfcc_mean.1} parent=5 // pred_region
      %s144 = ssub.s32 %s9, 1
      %s145 = smul.u32 16, %s14
      %p146 = scmp.lt.s32.totalorder %s145, 31
      %s147 = scalar_select %p146, %s145, 31
      %s148 = smul.addr %s147, 2
      %s149 = smul.addr %s148, 4
      %s150 = scalar_lea.vmem %s0, %s149
      %p151 = pneg %p35
      %p152 = pneg %p32
      %p153 = pneg %p56
      %p154 = pneg %p53
      %p155 = pneg %p77
      %p156 = pneg %p74
      %p157 = pneg %p103
      %p158 = pneg %p100
      %s159 = smul.u32 16, %s14
      %p160 = scmp.lt.s32.totalorder %s159, 31
      %s161 = scalar_select %p160, %s159, 31
      %s162 = smul.addr %s161, 8
      %s163 = scalar_lea.vmem %s3, %s162
      %s164 = smul.u32 16, %s14
      %p165 = scmp.lt.s32.totalorder %s164, 31
      %s166 = scalar_select %p165, %s164, 31
      %s167 = smul.addr %s166, 2
      %s168 = smul.addr %s167, 4
      %s169 = scalar_lea.vmem %s0, %s168
      %s170 = smul.u32 16, %s14
      %s171 = smul.u32 16, %s14
      %p172 = scmp.lt.s32.totalorder %s171, 31
      %s173 = scalar_select %p172, %s171, 31
      %s174 = smul.addr %s173, 8
      %s175 = scalar_lea.vmem %s3, %s174
      %s176 = smul.u32 16, %s14
      %v177 = vld [vmem:[%s169] sm:$0xff]
      %v178 = vld [vmem:[%s169 + $0x8] sm:$0xff]
      %v179 = vld [vmem:[%s169 + $0x10] sm:$0xff]
      %v180 = vld [vmem:[%s169 + $0x18] sm:$0xff]
      %v181 = vld [vmem:[%s169 + $0x20] sm:$0xff]
      %v182 = vld [vmem:[%s169 + $0x28] sm:$0xff]
      %v183 = vld [vmem:[%s169 + $0x30] sm:$0xff]
      %v184 = vld [vmem:[%s169 + $0x38] sm:$0xff]
      %v185 = vld [vmem:[%s169 + $0x40] sm:$0xff]
      %v186 = vld [vmem:[%s169 + $0x48] sm:$0xff]
      %v187 = vld [vmem:[%s169 + $0x50] sm:$0xff]
      %v188 = vld [vmem:[%s169 + $0x58] sm:$0xff]
      %v189 = vld [vmem:[%s169 + $0x60] sm:$0xff]
      %v190 = vld [vmem:[%s169 + $0x68] sm:$0xff]
      %v191 = vld [vmem:[%s169 + $0x70] sm:$0xff]
      %v192 = vld [vmem:[%s169 + $0x78] sm:$0xff]
      %v193 = vld [vmem:[%s1] sm:$0xff]
      %v194 = vld [vmem:[%s1 + $0x8] sm:$0xff]
      %v195 = vld [vmem:[%s1 + $0x10] sm:$0xff]
      %v196 = vld [vmem:[%s1 + $0x18] sm:$0xff]
      %v197 = vld [vmem:[%s1 + $0x20] sm:$0xff]
      %v198 = vld [vmem:[%s1 + $0x28] sm:$0xff]
      %v199 = vld [vmem:[%s1 + $0x30] sm:$0xff]
      %v200 = vld [vmem:[%s1 + $0x38] sm:$0xff]
      %v201 = vld [vmem:[%s1 + $0x40] sm:$0xff]
      %v202 = vld [vmem:[%s1 + $0x48] sm:$0xff]
      %v203 = vld [vmem:[%s1 + $0x50] sm:$0xff]
      %v204 = vld [vmem:[%s1 + $0x58] sm:$0xff]
      %v205 = vld [vmem:[%s1 + $0x60] sm:$0xff]
      %v206 = vld [vmem:[%s1 + $0x68] sm:$0xff]
      %v207 = vld [vmem:[%s1 + $0x70] sm:$0xff]
      %v208 = vld [vmem:[%s1 + $0x78] sm:$0xff]
      %v209 = vld [vmem:[%s1 + $0x80] sm:$0xff]
      %v210 = vld [vmem:[%s1 + $0x88] sm:$0xff]
      %v211 = vld [vmem:[%s1 + $0x90] sm:$0xff]
      %v212 = vld [vmem:[%s1 + $0x98] sm:$0xff]
      %v213 = vld [vmem:[%s1 + $0xa0] sm:$0xff]
      %v214 = vld [vmem:[%s1 + $0xa8] sm:$0xff]
      %v215 = vld [vmem:[%s1 + $0xb0] sm:$0xff]
      %v216 = vld [vmem:[%s1 + $0xb8] sm:$0xff]
      %v217 = vld [vmem:[%s1 + $0xc0] sm:$0xff]
      %v218 = vld [vmem:[%s1 + $0xc8] sm:$0xff]
      %v219 = vld [vmem:[%s1 + $0xd0] sm:$0xff]
      %v220 = vld [vmem:[%s1 + $0xd8] sm:$0xff]
      %v221 = vld [vmem:[%s1 + $0xe0] sm:$0xff]
      %v222 = vld [vmem:[%s1 + $0xe8] sm:$0xff]
      %v223 = vld [vmem:[%s1 + $0xf0] sm:$0xff]
      %v224 = vld [vmem:[%s1 + $0xf8] sm:$0xff]
      %v225 = vld [vmem:[%s1 + $0x100] sm:$0xff]
      %v226 = vld [vmem:[%s1 + $0x108] sm:$0xff]
      %v227 = vld [vmem:[%s1 + $0x110] sm:$0xff]
      %v228 = vld [vmem:[%s1 + $0x118] sm:$0xff]
      %v229 = vld [vmem:[%s1 + $0x120] sm:$0xff]
      %v230 = vld [vmem:[%s1 + $0x128] sm:$0xff]
      %v231 = vld [vmem:[%s1 + $0x130] sm:$0xff]
      %v232 = vld [vmem:[%s1 + $0x138] sm:$0xff]
      %v233 = vld [vmem:[%s1 + $0x140] sm:$0xff]
      %v234 = vld [vmem:[%s1 + $0x148] sm:$0xff]
      %v235 = vld [vmem:[%s1 + $0x150] sm:$0xff]
      %v236 = vld [vmem:[%s1 + $0x158] sm:$0xff]
      %v237 = vld [vmem:[%s1 + $0x160] sm:$0xff]
      %v238 = vld [vmem:[%s1 + $0x168] sm:$0xff]
      %v239 = vld [vmem:[%s1 + $0x170] sm:$0xff]
      %v240 = vld [vmem:[%s1 + $0x178] sm:$0xff]
      %v241 = vld [vmem:[%s1 + $0x180] sm:$0xff]
      %v242 = vld [vmem:[%s1 + $0x188] sm:$0xff]
      %v243 = vld [vmem:[%s1 + $0x190] sm:$0xff]
      %v244 = vld [vmem:[%s1 + $0x198] sm:$0xff]
      %v245 = vld [vmem:[%s1 + $0x1a0] sm:$0xff]
      %v246 = vld [vmem:[%s1 + $0x1a8] sm:$0xff]
      %v247 = vld [vmem:[%s1 + $0x1b0] sm:$0xff]
      %v248 = vld [vmem:[%s1 + $0x1b8] sm:$0xff]
      %v249 = vld [vmem:[%s1 + $0x1c0] sm:$0xff]
      %v250 = vld [vmem:[%s1 + $0x1c8] sm:$0xff]
      %v251 = vld [vmem:[%s1 + $0x1d0] sm:$0xff]
      %v252 = vld [vmem:[%s1 + $0x1d8] sm:$0xff]
      %v253 = vld [vmem:[%s1 + $0x1e0] sm:$0xff]
      %v254 = vld [vmem:[%s1 + $0x1e8] sm:$0xff]
      %v255 = vld [vmem:[%s1 + $0x1f0] sm:$0xff]
      %v256 = vld [vmem:[%s1 + $0x1f8] sm:$0xff]
      %v273 = vunpack.c.l.b16 %v177
      %v274 = vunpack.c.h.b16 %v177
      %v275 = vunpack.c.l.b16 %v178
      %v276 = vunpack.c.h.b16 %v178
      %v277 = vunpack.c.l.b16 %v179
      %v278 = vunpack.c.h.b16 %v179
      %v279 = vunpack.c.l.b16 %v180
      %v280 = vunpack.c.h.b16 %v180
      %v281 = vunpack.c.l.b16 %v181
      %v282 = vunpack.c.h.b16 %v181
      %v283 = vunpack.c.l.b16 %v182
      %v284 = vunpack.c.h.b16 %v182
      %v285 = vunpack.c.l.b16 %v183
      %v286 = vunpack.c.h.b16 %v183
      %v287 = vunpack.c.l.b16 %v184
      %v288 = vunpack.c.h.b16 %v184
      %v289 = vunpack.c.l.b16 %v185
      %v290 = vunpack.c.h.b16 %v185
      %v291 = vunpack.c.l.b16 %v186
      %v292 = vunpack.c.h.b16 %v186
      %v293 = vunpack.c.l.b16 %v187
      %v294 = vunpack.c.h.b16 %v187
      %v295 = vunpack.c.l.b16 %v188
      %v296 = vunpack.c.h.b16 %v188
      %v297 = vunpack.c.l.b16 %v189
      %v298 = vunpack.c.h.b16 %v189
      %v299 = vunpack.c.l.b16 %v190
      %v300 = vunpack.c.h.b16 %v190
      %v301 = vunpack.c.l.b16 %v191
      %v302 = vunpack.c.h.b16 %v191
      %v303 = vunpack.c.l.b16 %v192
      %v304 = vunpack.c.h.b16 %v192
      %v305 = vpack.c.b16 %v275, %v273
      %v306 = vpack.c.b16 %v276, %v274
      %v307 = vpack.c.b16 %v279, %v277
      %v308 = vpack.c.b16 %v280, %v278
      %v309 = vpack.c.b16 %v283, %v281
      %v310 = vpack.c.b16 %v284, %v282
      %v311 = vpack.c.b16 %v287, %v285
      %v312 = vpack.c.b16 %v288, %v286
      %v313 = vpack.c.b16 %v291, %v289
      %v314 = vpack.c.b16 %v292, %v290
      %v315 = vpack.c.b16 %v295, %v293
      %v316 = vpack.c.b16 %v296, %v294
      %v317 = vpack.c.b16 %v299, %v297
      %v318 = vpack.c.b16 %v300, %v298
      %v319 = vpack.c.b16 %v303, %v301
      %v320 = vpack.c.b16 %v304, %v302
      %v401 = vunpack.c.l.b16 %v193
      %v402 = vunpack.c.h.b16 %v193
      %v403 = vunpack.c.l.b16 %v194
      %v404 = vunpack.c.h.b16 %v194
      %v405 = vunpack.c.l.b16 %v195
      %v406 = vunpack.c.h.b16 %v195
      %v407 = vunpack.c.l.b16 %v196
      %v408 = vunpack.c.h.b16 %v196
      %v409 = vunpack.c.l.b16 %v197
      %v410 = vunpack.c.h.b16 %v197
      %v411 = vunpack.c.l.b16 %v198
      %v412 = vunpack.c.h.b16 %v198
      %v413 = vunpack.c.l.b16 %v199
      %v414 = vunpack.c.h.b16 %v199
      %v415 = vunpack.c.l.b16 %v200
      %v416 = vunpack.c.h.b16 %v200
      %v417 = vunpack.c.l.b16 %v201
      %v418 = vunpack.c.h.b16 %v201
      %v419 = vunpack.c.l.b16 %v202
      %v420 = vunpack.c.h.b16 %v202
      %v421 = vunpack.c.l.b16 %v203
      %v422 = vunpack.c.h.b16 %v203
      %v423 = vunpack.c.l.b16 %v204
      %v424 = vunpack.c.h.b16 %v204
      %v425 = vunpack.c.l.b16 %v205
      %v426 = vunpack.c.h.b16 %v205
      %v427 = vunpack.c.l.b16 %v206
      %v428 = vunpack.c.h.b16 %v206
      %v429 = vunpack.c.l.b16 %v207
      %v430 = vunpack.c.h.b16 %v207
      %v431 = vunpack.c.l.b16 %v208
      %v432 = vunpack.c.h.b16 %v208
      %v433 = vunpack.c.l.b16 %v209
      %v434 = vunpack.c.h.b16 %v209
      %v435 = vunpack.c.l.b16 %v210
      %v436 = vunpack.c.h.b16 %v210
      %v437 = vunpack.c.l.b16 %v211
      %v438 = vunpack.c.h.b16 %v211
      %v439 = vunpack.c.l.b16 %v212
      %v440 = vunpack.c.h.b16 %v212
      %v441 = vunpack.c.l.b16 %v213
      %v442 = vunpack.c.h.b16 %v213
      %v443 = vunpack.c.l.b16 %v214
      %v444 = vunpack.c.h.b16 %v214
      %v445 = vunpack.c.l.b16 %v215
      %v446 = vunpack.c.h.b16 %v215
      %v447 = vunpack.c.l.b16 %v216
      %v448 = vunpack.c.h.b16 %v216
      %v449 = vunpack.c.l.b16 %v217
      %v450 = vunpack.c.h.b16 %v217
      %v451 = vunpack.c.l.b16 %v218
      %v452 = vunpack.c.h.b16 %v218
      %v453 = vunpack.c.l.b16 %v219
      %v454 = vunpack.c.h.b16 %v219
      %v455 = vunpack.c.l.b16 %v220
      %v456 = vunpack.c.h.b16 %v220
      %v457 = vunpack.c.l.b16 %v221
      %v458 = vunpack.c.h.b16 %v221
      %v459 = vunpack.c.l.b16 %v222
      %v460 = vunpack.c.h.b16 %v222
      %v461 = vunpack.c.l.b16 %v223
      %v462 = vunpack.c.h.b16 %v223
      %v463 = vunpack.c.l.b16 %v224
      %v464 = vunpack.c.h.b16 %v224
      %v465 = vunpack.c.l.b16 %v225
      %v466 = vunpack.c.h.b16 %v225
      %v467 = vunpack.c.l.b16 %v226
      %v468 = vunpack.c.h.b16 %v226
      %v469 = vunpack.c.l.b16 %v227
      %v470 = vunpack.c.h.b16 %v227
      %v471 = vunpack.c.l.b16 %v228
      %v472 = vunpack.c.h.b16 %v228
      %v473 = vunpack.c.l.b16 %v229
      %v474 = vunpack.c.h.b16 %v229
      %v475 = vunpack.c.l.b16 %v230
      %v476 = vunpack.c.h.b16 %v230
      %v477 = vunpack.c.l.b16 %v231
      %v478 = vunpack.c.h.b16 %v231
      %v479 = vunpack.c.l.b16 %v232
      %v480 = vunpack.c.h.b16 %v232
      %v481 = vunpack.c.l.b16 %v233
      %v482 = vunpack.c.h.b16 %v233
      %v483 = vunpack.c.l.b16 %v234
      %v484 = vunpack.c.h.b16 %v234
      %v485 = vunpack.c.l.b16 %v235
      %v486 = vunpack.c.h.b16 %v235
      %v487 = vunpack.c.l.b16 %v236
      %v488 = vunpack.c.h.b16 %v236
      %v489 = vunpack.c.l.b16 %v237
      %v490 = vunpack.c.h.b16 %v237
      %v491 = vunpack.c.l.b16 %v238
      %v492 = vunpack.c.h.b16 %v238
      %v493 = vunpack.c.l.b16 %v239
      %v494 = vunpack.c.h.b16 %v239
      %v495 = vunpack.c.l.b16 %v240
      %v496 = vunpack.c.h.b16 %v240
      %v497 = vunpack.c.l.b16 %v241
      %v498 = vunpack.c.h.b16 %v241
      %v499 = vunpack.c.l.b16 %v242
      %v500 = vunpack.c.h.b16 %v242
      %v501 = vunpack.c.l.b16 %v243
      %v502 = vunpack.c.h.b16 %v243
      %v503 = vunpack.c.l.b16 %v244
      %v504 = vunpack.c.h.b16 %v244
      %v505 = vunpack.c.l.b16 %v245
      %v506 = vunpack.c.h.b16 %v245
      %v507 = vunpack.c.l.b16 %v246
      %v508 = vunpack.c.h.b16 %v246
      %v509 = vunpack.c.l.b16 %v247
      %v510 = vunpack.c.h.b16 %v247
      %v511 = vunpack.c.l.b16 %v248
      %v512 = vunpack.c.h.b16 %v248
      %v513 = vunpack.c.l.b16 %v249
      %v514 = vunpack.c.h.b16 %v249
      %v515 = vunpack.c.l.b16 %v250
      %v516 = vunpack.c.h.b16 %v250
      %v517 = vunpack.c.l.b16 %v251
      %v518 = vunpack.c.h.b16 %v251
      %v519 = vunpack.c.l.b16 %v252
      %v520 = vunpack.c.h.b16 %v252
      %v521 = vunpack.c.l.b16 %v253
      %v522 = vunpack.c.h.b16 %v253
      %v523 = vunpack.c.l.b16 %v254
      %v524 = vunpack.c.h.b16 %v254
      %v525 = vunpack.c.l.b16 %v255
      %v526 = vunpack.c.h.b16 %v255
      %v527 = vunpack.c.l.b16 %v256
      %v528 = vunpack.c.h.b16 %v256
      %v529 = vpack.c.b16 %v405, %v401
      %v530 = vpack.c.b16 %v406, %v402
      %v531 = vpack.c.b16 %v407, %v403
      %v532 = vpack.c.b16 %v408, %v404
      %v533 = vpack.c.b16 %v413, %v409
      %v534 = vpack.c.b16 %v414, %v410
      %v535 = vpack.c.b16 %v415, %v411
      %v536 = vpack.c.b16 %v416, %v412
      %v537 = vpack.c.b16 %v421, %v417
      %v538 = vpack.c.b16 %v422, %v418
      %v539 = vpack.c.b16 %v423, %v419
      %v540 = vpack.c.b16 %v424, %v420
      %v541 = vpack.c.b16 %v429, %v425
      %v542 = vpack.c.b16 %v430, %v426
      %v543 = vpack.c.b16 %v431, %v427
      %v544 = vpack.c.b16 %v432, %v428
      %v545 = vpack.c.b16 %v437, %v433
      %v546 = vpack.c.b16 %v438, %v434
      %v547 = vpack.c.b16 %v439, %v435
      %v548 = vpack.c.b16 %v440, %v436
      %v549 = vpack.c.b16 %v445, %v441
      %v550 = vpack.c.b16 %v446, %v442
      %v551 = vpack.c.b16 %v447, %v443
      %v552 = vpack.c.b16 %v448, %v444
      %v553 = vpack.c.b16 %v453, %v449
      %v554 = vpack.c.b16 %v454, %v450
      %v555 = vpack.c.b16 %v455, %v451
      %v556 = vpack.c.b16 %v456, %v452
      %v557 = vpack.c.b16 %v461, %v457
      %v558 = vpack.c.b16 %v462, %v458
      %v559 = vpack.c.b16 %v463, %v459
      %v560 = vpack.c.b16 %v464, %v460
      %v561 = vpack.c.b16 %v469, %v465
      %v562 = vpack.c.b16 %v470, %v466
      %v563 = vpack.c.b16 %v471, %v467
      %v564 = vpack.c.b16 %v472, %v468
      %v565 = vpack.c.b16 %v477, %v473
      %v566 = vpack.c.b16 %v478, %v474
      %v567 = vpack.c.b16 %v479, %v475
      %v568 = vpack.c.b16 %v480, %v476
      %v569 = vpack.c.b16 %v485, %v481
      %v570 = vpack.c.b16 %v486, %v482
      %v571 = vpack.c.b16 %v487, %v483
      %v572 = vpack.c.b16 %v488, %v484
      %v573 = vpack.c.b16 %v493, %v489
      %v574 = vpack.c.b16 %v494, %v490
      %v575 = vpack.c.b16 %v495, %v491
      %v576 = vpack.c.b16 %v496, %v492
      %v577 = vpack.c.b16 %v501, %v497
      %v578 = vpack.c.b16 %v502, %v498
      %v579 = vpack.c.b16 %v503, %v499
      %v580 = vpack.c.b16 %v504, %v500
      %v581 = vpack.c.b16 %v509, %v505
      %v582 = vpack.c.b16 %v510, %v506
      %v583 = vpack.c.b16 %v511, %v507
      %v584 = vpack.c.b16 %v512, %v508
      %v585 = vpack.c.b16 %v517, %v513
      %v586 = vpack.c.b16 %v518, %v514
      %v587 = vpack.c.b16 %v519, %v515
      %v588 = vpack.c.b16 %v520, %v516
      %v589 = vpack.c.b16 %v525, %v521
      %v590 = vpack.c.b16 %v526, %v522
      %v591 = vpack.c.b16 %v527, %v523
      %v592 = vpack.c.b16 %v528, %v524
      %657 = vmatprep.subr.bf16.mxu0 %v530
      %658 = vmatpush1.bf16.msra.mxu0 %v529
      %659 = vmatprep.subr.bf16.mxu0 %v534
      %660 = vmatpush1.bf16.msra.mxu0 %v533
      %661 = vmatprep.subr.bf16.mxu0 %v538
      %662 = vmatpush1.bf16.msra.mxu0 %v537
      %663 = vmatprep.subr.bf16.mxu0 %v542
      %664 = vmatpush1.bf16.msra.mxu0 %v541
      %665 = vmatprep.subr.bf16.mxu0 %v546
      %666 = vmatpush1.bf16.msra.mxu0 %v545
      %667 = vmatprep.subr.bf16.mxu0 %v550
      %668 = vmatpush1.bf16.msra.mxu0 %v549
      %669 = vmatprep.subr.bf16.mxu0 %v554
      %670 = vmatpush1.bf16.msra.mxu0 %v553
      %671 = vmatprep.subr.bf16.mxu0 %v558
      %672 = vmatpush1.bf16.msra.mxu0 %v557
      %673 = vmatprep.subr.bf16.mxu0 %v562
      %674 = vmatpush1.bf16.msra.mxu0 %v561
      %675 = vmatprep.subr.bf16.mxu0 %v566
      %676 = vmatpush1.bf16.msra.mxu0 %v565
      %677 = vmatprep.subr.bf16.mxu0 %v570
      %678 = vmatpush1.bf16.msra.mxu0 %v569
      %679 = vmatprep.subr.bf16.mxu0 %v574
      %680 = vmatpush1.bf16.msra.mxu0 %v573
      %681 = vmatprep.subr.bf16.mxu0 %v578
      %682 = vmatpush1.bf16.msra.mxu0 %v577
      %683 = vmatprep.subr.bf16.mxu0 %v582
      %684 = vmatpush1.bf16.msra.mxu0 %v581
      %685 = vmatprep.subr.bf16.mxu0 %v586
      %686 = vmatpush1.bf16.msra.mxu0 %v585
      %687 = vmatprep.subr.bf16.mxu0 %v590
      %688 = vmatpush1.bf16.msra.mxu0 %v589
      %689 = vmatprep.mubr.bf16.mxu0 %v306
      %690 = vmatmul.mubr.bf16.gmra.mrb[0].mxu0 %v305
      %v691 = vpop.f32.mrb[0].mxu0
      %v692 = vadd.f32 0.0, %v691
      %v693 = vpop.f32.mrb[0].mxu0
      %v694 = vadd.f32 0.0, %v693
      %v695 = vpop.f32.mrb[0].mxu0
      %v696 = vadd.f32 0.0, %v695
      %v697 = vpop.f32.mrb[0].mxu0
      %v698 = vadd.f32 0.0, %v697
      %699 = vmatprep.mubr.bf16.mxu0 %v308
      %700 = vmatmul.mubr.bf16.gmra.mrb[0].mxu0 %v307
      %v701 = vpop.f32.mrb[0].mxu0
      %v702 = vadd.f32 0.0, %v701
      %v703 = vpop.f32.mrb[0].mxu0
      %v704 = vadd.f32 0.0, %v703
      %v705 = vpop.f32.mrb[0].mxu0
      %v706 = vadd.f32 0.0, %v705
      %v707 = vpop.f32.mrb[0].mxu0
      %v708 = vadd.f32 0.0, %v707
      %709 = vmatprep.mubr.bf16.mxu0 %v310
      %710 = vmatmul.mubr.bf16.gmra.mrb[0].mxu0 %v309
      %v711 = vpop.f32.mrb[0].mxu0
      %v712 = vadd.f32 0.0, %v711
      %v713 = vpop.f32.mrb[0].mxu0
      %v714 = vadd.f32 0.0, %v713
      %v715 = vpop.f32.mrb[0].mxu0
      %v716 = vadd.f32 0.0, %v715
      %v717 = vpop.f32.mrb[0].mxu0
      %v718 = vadd.f32 0.0, %v717
      %719 = vmatprep.mubr.bf16.mxu0 %v312
      %720 = vmatmul.mubr.bf16.gmra.mrb[0].mxu0 %v311
      %v721 = vpop.f32.mrb[0].mxu0
      %v722 = vadd.f32 0.0, %v721
      %v723 = vpop.f32.mrb[0].mxu0
      %v724 = vadd.f32 0.0, %v723
      %v725 = vpop.f32.mrb[0].mxu0
      %v726 = vadd.f32 0.0, %v725
      %v727 = vpop.f32.mrb[0].mxu0
      %v728 = vadd.f32 0.0, %v727
      %729 = vmatprep.mubr.bf16.mxu0 %v314
      %730 = vmatmul.mubr.bf16.gmra.mrb[0].mxu0 %v313
      %v731 = vpop.f32.mrb[0].mxu0
      %v732 = vadd.f32 0.0, %v731
      %v733 = vpop.f32.mrb[0].mxu0
      %v734 = vadd.f32 0.0, %v733
      %v735 = vpop.f32.mrb[0].mxu0
      %v736 = vadd.f32 0.0, %v735
      %v737 = vpop.f32.mrb[0].mxu0
      %v738 = vadd.f32 0.0, %v737
      %739 = vmatprep.mubr.bf16.mxu0 %v316
      %740 = vmatmul.mubr.bf16.gmra.mrb[0].mxu0 %v315
      %v741 = vpop.f32.mrb[0].mxu0
      %v742 = vadd.f32 0.0, %v741
      %v743 = vpop.f32.mrb[0].mxu0
      %v744 = vadd.f32 0.0, %v743
      %v745 = vpop.f32.mrb[0].mxu0
      %v746 = vadd.f32 0.0, %v745
      %v747 = vpop.f32.mrb[0].mxu0
      %v748 = vadd.f32 0.0, %v747
      %749 = vmatprep.mubr.bf16.mxu0 %v318
      %750 = vmatmul.mubr.bf16.gmra.mrb[0].mxu0 %v317
      %v751 = vpop.f32.mrb[0].mxu0
      %v752 = vadd.f32 0.0, %v751
      %v753 = vpop.f32.mrb[0].mxu0
      %v754 = vadd.f32 0.0, %v753
      %v755 = vpop.f32.mrb[0].mxu0
      %v756 = vadd.f32 0.0, %v755
      %v757 = vpop.f32.mrb[0].mxu0
      %v758 = vadd.f32 0.0, %v757
      %759 = vmatprep.mubr.bf16.mxu0 %v320
      %760 = vmatmul.mubr.bf16.gmra.mrb[0].mxu0 %v319
      %v761 = vpop.f32.mrb[0].mxu0
      %v762 = vadd.f32 0.0, %v761
      %v763 = vpop.f32.mrb[0].mxu0
      %v764 = vadd.f32 0.0, %v763
      %v765 = vpop.f32.mrb[0].mxu0
      %v766 = vadd.f32 0.0, %v765
      %v767 = vpop.f32.mrb[0].mxu0
      %v768 = vadd.f32 0.0, %v767
      %769 = vdwg.mxu0
      %770 = vmatprep.subr.bf16.mxu0 %v532
      %771 = vmatpush1.bf16.msra.mxu0 %v531
      %772 = vmatprep.subr.bf16.mxu0 %v536
      %773 = vmatpush1.bf16.msra.mxu0 %v535
      %774 = vmatprep.subr.bf16.mxu0 %v540
      %775 = vmatpush1.bf16.msra.mxu0 %v539
      %776 = vmatprep.subr.bf16.mxu0 %v544
      %777 = vmatpush1.bf16.msra.mxu0 %v543
      %778 = vmatprep.subr.bf16.mxu0 %v548
      %779 = vmatpush1.bf16.msra.mxu0 %v547
      %780 = vmatprep.subr.bf16.mxu0 %v552
      %781 = vmatpush1.bf16.msra.mxu0 %v551
      %782 = vmatprep.subr.bf16.mxu0 %v556
      %783 = vmatpush1.bf16.msra.mxu0 %v555
      %784 = vmatprep.subr.bf16.mxu0 %v560
      %785 = vmatpush1.bf16.msra.mxu0 %v559
      %786 = vmatprep.subr.bf16.mxu0 %v564
      %787 = vmatpush1.bf16.msra.mxu0 %v563
      %788 = vmatprep.subr.bf16.mxu0 %v568
      %789 = vmatpush1.bf16.msra.mxu0 %v567
      %790 = vmatprep.subr.bf16.mxu0 %v572
      %791 = vmatpush1.bf16.msra.mxu0 %v571
      %792 = vmatprep.subr.bf16.mxu0 %v576
      %793 = vmatpush1.bf16.msra.mxu0 %v575
      %794 = vmatprep.subr.bf16.mxu0 %v580
      %795 = vmatpush1.bf16.msra.mxu0 %v579
      %796 = vmatprep.subr.bf16.mxu0 %v584
      %797 = vmatpush1.bf16.msra.mxu0 %v583
      %798 = vmatprep.subr.bf16.mxu0 %v588
      %799 = vmatpush1.bf16.msra.mxu0 %v587
      %800 = vmatprep.subr.bf16.mxu0 %v592
      %801 = vmatpush1.bf16.msra.mxu0 %v591
      %802 = vmatprep.mubr.bf16.mxu0 %v306
      %803 = vmatmul.mubr.bf16.gmra.mrb[0].mxu0 %v305
      %v804 = vpop.f32.mrb[0].mxu0
      %v805 = vadd.f32 0.0, %v804
      %v806 = vpop.f32.mrb[0].mxu0
      %v807 = vadd.f32 0.0, %v806
      %v808 = vpop.f32.mrb[0].mxu0
      %v809 = vadd.f32 0.0, %v808
      %v810 = vpop.f32.mrb[0].mxu0
      %v811 = vadd.f32 0.0, %v810
      %812 = vmatprep.mubr.bf16.mxu0 %v308
      %813 = vmatmul.mubr.bf16.gmra.mrb[0].mxu0 %v307
      %v814 = vpop.f32.mrb[0].mxu0
      %v815 = vadd.f32 0.0, %v814
      %v816 = vpop.f32.mrb[0].mxu0
      %v817 = vadd.f32 0.0, %v816
      %v818 = vpop.f32.mrb[0].mxu0
      %v819 = vadd.f32 0.0, %v818
      %v820 = vpop.f32.mrb[0].mxu0
      %v821 = vadd.f32 0.0, %v820
      %822 = vmatprep.mubr.bf16.mxu0 %v310
      %823 = vmatmul.mubr.bf16.gmra.mrb[0].mxu0 %v309
      %v824 = vpop.f32.mrb[0].mxu0
      %v825 = vadd.f32 0.0, %v824
      %v826 = vpop.f32.mrb[0].mxu0
      %v827 = vadd.f32 0.0, %v826
      %v828 = vpop.f32.mrb[0].mxu0
      %v829 = vadd.f32 0.0, %v828
      %v830 = vpop.f32.mrb[0].mxu0
      %v831 = vadd.f32 0.0, %v830
      %832 = vmatprep.mubr.bf16.mxu0 %v312
      %833 = vmatmul.mubr.bf16.gmra.mrb[0].mxu0 %v311
      %v834 = vpop.f32.mrb[0].mxu0
      %v835 = vadd.f32 0.0, %v834
      %v836 = vpop.f32.mrb[0].mxu0
      %v837 = vadd.f32 0.0, %v836
      %v838 = vpop.f32.mrb[0].mxu0
      %v839 = vadd.f32 0.0, %v838
      %v840 = vpop.f32.mrb[0].mxu0
      %v841 = vadd.f32 0.0, %v840
      %842 = vmatprep.mubr.bf16.mxu0 %v314
      %843 = vmatmul.mubr.bf16.gmra.mrb[0].mxu0 %v313
      %v844 = vpop.f32.mrb[0].mxu0
      %v845 = vadd.f32 0.0, %v844
      %v846 = vpop.f32.mrb[0].mxu0
      %v847 = vadd.f32 0.0, %v846
      %v848 = vpop.f32.mrb[0].mxu0
      %v849 = vadd.f32 0.0, %v848
      %v850 = vpop.f32.mrb[0].mxu0
      %v851 = vadd.f32 0.0, %v850
      %852 = vmatprep.mubr.bf16.mxu0 %v316
      %853 = vmatmul.mubr.bf16.gmra.mrb[0].mxu0 %v315
      %v854 = vpop.f32.mrb[0].mxu0
      %v855 = vadd.f32 0.0, %v854
      %v856 = vpop.f32.mrb[0].mxu0
      %v857 = vadd.f32 0.0, %v856
      %v858 = vpop.f32.mrb[0].mxu0
      %v859 = vadd.f32 0.0, %v858
      %v860 = vpop.f32.mrb[0].mxu0
      %v861 = vadd.f32 0.0, %v860
      %862 = vmatprep.mubr.bf16.mxu0 %v318
      %863 = vmatmul.mubr.bf16.gmra.mrb[0].mxu0 %v317
      %v864 = vpop.f32.mrb[0].mxu0
      %v865 = vadd.f32 0.0, %v864
      %v866 = vpop.f32.mrb[0].mxu0
      %v867 = vadd.f32 0.0, %v866
      %v868 = vpop.f32.mrb[0].mxu0
      %v869 = vadd.f32 0.0, %v868
      %v870 = vpop.f32.mrb[0].mxu0
      %v871 = vadd.f32 0.0, %v870
      %872 = vmatprep.mubr.bf16.mxu0 %v320
      %873 = vmatmul.mubr.bf16.gmra.mrb[0].mxu0 %v319
      %v874 = vpop.f32.mrb[0].mxu0
      %v875 = vadd.f32 0.0, %v874
      %v876 = vpop.f32.mrb[0].mxu0
      %v877 = vadd.f32 0.0, %v876
      %v878 = vpop.f32.mrb[0].mxu0
      %v879 = vadd.f32 0.0, %v878
      %v880 = vpop.f32.mrb[0].mxu0
      %v881 = vadd.f32 0.0, %v880
      %882 = vdwg.mxu0
      %v883 = vmul.f32 %v692, %v692
      %v884 = vmul.f32 %v694, %v694
      %v885 = vmul.f32 %v696, %v696
      %v886 = vmul.f32 %v698, %v698
      %v887 = vmul.f32 %v702, %v702
      %v888 = vmul.f32 %v704, %v704
      %v889 = vmul.f32 %v706, %v706
      %v890 = vmul.f32 %v708, %v708
      %v891 = vmul.f32 %v712, %v712
      %v892 = vmul.f32 %v714, %v714
      %v893 = vmul.f32 %v716, %v716
      %v894 = vmul.f32 %v718, %v718
      %v895 = vmul.f32 %v722, %v722
      %v896 = vmul.f32 %v724, %v724
      %v897 = vmul.f32 %v726, %v726
      %v898 = vmul.f32 %v728, %v728
      %v899 = vmul.f32 %v732, %v732
      %v900 = vmul.f32 %v734, %v734
      %v901 = vmul.f32 %v736, %v736
      %v902 = vmul.f32 %v738, %v738
      %v903 = vmul.f32 %v742, %v742
      %v904 = vmul.f32 %v744, %v744
      %v905 = vmul.f32 %v746, %v746
      %v906 = vmul.f32 %v748, %v748
      %v907 = vmul.f32 %v752, %v752
      %v908 = vmul.f32 %v754, %v754
      %v909 = vmul.f32 %v756, %v756
      %v910 = vmul.f32 %v758, %v758
      %v911 = vmul.f32 %v762, %v762
      %v912 = vmul.f32 %v764, %v764
      %v913 = vmul.f32 %v766, %v766
      %v914 = vmul.f32 %v768, %v768
      %v915 = vmul.f32 %v805, %v805
      %v916 = vmul.f32 %v807, %v807
      %v917 = vmul.f32 %v809, %v809
      %v918 = vmul.f32 %v811, %v811
      %v919 = vmul.f32 %v815, %v815
      %v920 = vmul.f32 %v817, %v817
      %v921 = vmul.f32 %v819, %v819
      %v922 = vmul.f32 %v821, %v821
      %v923 = vmul.f32 %v825, %v825
      %v924 = vmul.f32 %v827, %v827
      %v925 = vmul.f32 %v829, %v829
      %v926 = vmul.f32 %v831, %v831
      %v927 = vmul.f32 %v835, %v835
      %v928 = vmul.f32 %v837, %v837
      %v929 = vmul.f32 %v839, %v839
      %v930 = vmul.f32 %v841, %v841
      %v931 = vmul.f32 %v845, %v845
      %v932 = vmul.f32 %v847, %v847
      %v933 = vmul.f32 %v849, %v849
      %v934 = vmul.f32 %v851, %v851
      %v935 = vmul.f32 %v855, %v855
      %v936 = vmul.f32 %v857, %v857
      %v937 = vmul.f32 %v859, %v859
      %v938 = vmul.f32 %v861, %v861
      %v939 = vmul.f32 %v865, %v865
      %v940 = vmul.f32 %v867, %v867
      %v941 = vmul.f32 %v869, %v869
      %v942 = vmul.f32 %v871, %v871
      %v943 = vmul.f32 %v875, %v875
      %v944 = vmul.f32 %v877, %v877
      %v945 = vmul.f32 %v879, %v879
      %v946 = vmul.f32 %v881, %v881
      %v947 = vadd.f32 %v883, %v915
      %v948 = vadd.f32 %v884, %v916
      %v949 = vadd.f32 %v885, %v917
      %v950 = vadd.f32 %v886, %v918
      %v951 = vadd.f32 %v887, %v919
      %v952 = vadd.f32 %v888, %v920
      %v953 = vadd.f32 %v889, %v921
      %v954 = vadd.f32 %v890, %v922
      %v955 = vadd.f32 %v891, %v923
      %v956 = vadd.f32 %v892, %v924
      %v957 = vadd.f32 %v893, %v925
      %v958 = vadd.f32 %v894, %v926
      %v959 = vadd.f32 %v895, %v927
      %v960 = vadd.f32 %v896, %v928
      %v961 = vadd.f32 %v897, %v929
      %v962 = vadd.f32 %v898, %v930
      %v963 = vadd.f32 %v899, %v931
      %v964 = vadd.f32 %v900, %v932
      %v965 = vadd.f32 %v901, %v933
      %v966 = vadd.f32 %v902, %v934
      %v967 = vadd.f32 %v903, %v935
      %v968 = vadd.f32 %v904, %v936
      %v969 = vadd.f32 %v905, %v937
      %v970 = vadd.f32 %v906, %v938
      %v971 = vadd.f32 %v907, %v939
      %v972 = vadd.f32 %v908, %v940
      %v973 = vadd.f32 %v909, %v941
      %v974 = vadd.f32 %v910, %v942
      %v975 = vadd.f32 %v911, %v943
      %v976 = vadd.f32 %v912, %v944
      %v977 = vadd.f32 %v913, %v945
      %v978 = vadd.f32 %v914, %v946
      %v979 = vld [vmem:[%s2] sm:$0xff]
      %v980 = vld [vmem:[%s2 + $0x8] sm:$0xff]
      %v981 = vld [vmem:[%s2 + $0x10] sm:$0xff]
      %v982 = vld [vmem:[%s2 + $0x18] sm:$0xff]
      %v983 = vld [vmem:[%s2 + $0x20] sm:$0xff]
      %v984 = vld [vmem:[%s2 + $0x28] sm:$0xff]
      %v985 = vld [vmem:[%s2 + $0x30] sm:$0xff]
      %v986 = vld [vmem:[%s2 + $0x38] sm:$0xff]
      %v987 = vld [vmem:[%s2 + $0x40] sm:$0xff]
      %v988 = vld [vmem:[%s2 + $0x48] sm:$0xff]
      %v989 = vld [vmem:[%s2 + $0x50] sm:$0xff]
      %v990 = vld [vmem:[%s2 + $0x58] sm:$0xff]
      %v991 = vld [vmem:[%s2 + $0x60] sm:$0xff]
      %v992 = vld [vmem:[%s2 + $0x68] sm:$0xff]
      %v993 = vld [vmem:[%s2 + $0x70] sm:$0xff]
      %v994 = vld [vmem:[%s2 + $0x78] sm:$0xff]
      %v995 = vld [vmem:[%s2 + $0x80] sm:$0xff]
      %v996 = vld [vmem:[%s2 + $0x88] sm:$0xff]
      %v997 = vld [vmem:[%s2 + $0x90] sm:$0xff]
      %v998 = vld [vmem:[%s2 + $0x98] sm:$0xff]
      %v999 = vld [vmem:[%s2 + $0xa0] sm:$0xff]
      %v1000 = vld [vmem:[%s2 + $0xa8] sm:$0xff]
      %v1001 = vld [vmem:[%s2 + $0xb0] sm:$0xff]
      %v1002 = vld [vmem:[%s2 + $0xb8] sm:$0xff]
      %v1003 = vld [vmem:[%s2 + $0xc0] sm:$0xff]
      %v1004 = vld [vmem:[%s2 + $0xc8] sm:$0xff]
      %v1005 = vld [vmem:[%s2 + $0xd0] sm:$0xff]
      %v1006 = vld [vmem:[%s2 + $0xd8] sm:$0xff]
      %v1007 = vld [vmem:[%s2 + $0xe0] sm:$0xff]
      %v1008 = vld [vmem:[%s2 + $0xe8] sm:$0xff]
      %v1009 = vld [vmem:[%s2 + $0xf0] sm:$0xff]
      %v1010 = vld [vmem:[%s2 + $0xf8] sm:$0xff]
      %1011 = vmatprep.subr.mxu0 0.0
      %1012 = vmatpush1.msra.mxu0 %v979
      %1013 = vmatprep.subr.mxu0 0.0
      %1014 = vmatpush1.msra.mxu0 %v980
      %1015 = vmatprep.subr.mxu0 0.0
      %1016 = vmatpush1.msra.mxu0 %v981
      %1017 = vmatprep.subr.mxu0 0.0
      %1018 = vmatpush1.msra.mxu0 %v982
      %1019 = vmatprep.subr.mxu0 0.0
      %1020 = vmatpush1.msra.mxu0 %v983
      %1021 = vmatprep.subr.mxu0 0.0
      %1022 = vmatpush1.msra.mxu0 %v984
      %1023 = vmatprep.subr.mxu0 0.0
      %1024 = vmatpush1.msra.mxu0 %v985
      %1025 = vmatprep.subr.mxu0 0.0
      %1026 = vmatpush1.msra.mxu0 %v986
      %1027 = vmatprep.subr.mxu0 0.0
      %1028 = vmatpush1.msra.mxu0 %v987
      %1029 = vmatprep.subr.mxu0 0.0
      %1030 = vmatpush1.msra.mxu0 %v988
      %1031 = vmatprep.subr.mxu0 0.0
      %1032 = vmatpush1.msra.mxu0 %v989
      %1033 = vmatprep.subr.mxu0 0.0
      %1034 = vmatpush1.msra.mxu0 %v990
      %1035 = vmatprep.subr.mxu0 0.0
      %1036 = vmatpush1.msra.mxu0 %v991
      %1037 = vmatprep.subr.mxu0 0.0
      %1038 = vmatpush1.msra.mxu0 %v992
      %1039 = vmatprep.subr.mxu0 0.0
      %1040 = vmatpush1.msra.mxu0 %v993
      %1041 = vmatprep.subr.mxu0 0.0
      %1042 = vmatpush1.msra.mxu0 %v994
      %1043 = vmatprep.subr.mxu0 0.0
      %1044 = vmatpush1.msra.mxu0 %v995
      %1045 = vmatprep.subr.mxu0 0.0
      %1046 = vmatpush1.msra.mxu0 %v996
      %1047 = vmatprep.subr.mxu0 0.0
      %1048 = vmatpush1.msra.mxu0 %v997
      %1049 = vmatprep.subr.mxu0 0.0
      %1050 = vmatpush1.msra.mxu0 %v998
      %1051 = vmatprep.subr.mxu0 0.0
      %1052 = vmatpush1.msra.mxu0 %v999
      %1053 = vmatprep.subr.mxu0 0.0
      %1054 = vmatpush1.msra.mxu0 %v1000
      %1055 = vmatprep.subr.mxu0 0.0
      %1056 = vmatpush1.msra.mxu0 %v1001
      %1057 = vmatprep.subr.mxu0 0.0
      %1058 = vmatpush1.msra.mxu0 %v1002
      %1059 = vmatprep.subr.mxu0 0.0
      %1060 = vmatpush1.msra.mxu0 %v1003
      %1061 = vmatprep.subr.mxu0 0.0
      %1062 = vmatpush1.msra.mxu0 %v1004
      %1063 = vmatprep.subr.mxu0 0.0
      %1064 = vmatpush1.msra.mxu0 %v1005
      %1065 = vmatprep.subr.mxu0 0.0
      %1066 = vmatpush1.msra.mxu0 %v1006
      %1067 = vmatprep.subr.mxu0 0.0
      %1068 = vmatpush1.msra.mxu0 %v1007
      %1069 = vmatprep.subr.mxu0 0.0
      %1070 = vmatpush1.msra.mxu0 %v1008
      %1071 = vmatprep.subr.mxu0 0.0
      %1072 = vmatpush1.msra.mxu0 %v1009
      %1073 = vmatprep.subr.mxu0 0.0
      %1074 = vmatpush1.msra.mxu0 %v1010
      %1075 = vmatprep.mubr.f32.mxu0 %v948
      %1076 = vmatmul.mubr.f32.gmra.mrb[0].mxu0 %v947
      %v1077 = vpop.f32.mrb[0].mxu0
      %v1078 = vadd.f32 0.0, %v1077
      %v1079 = vpop.f32.mrb[0].mxu0
      %1080 = vmatprep.mubr.f32.mxu0 %v950
      %1081 = vmatmul.mubr.f32.gmra.mrb[0].mxu0 %v949
      %v1082 = vpop.f32.mrb[0].mxu0
      %v1083 = vadd.f32 0.0, %v1082
      %v1084 = vpop.f32.mrb[0].mxu0
      %1085 = vmatprep.mubr.f32.mxu0 %v952
      %1086 = vmatmul.mubr.f32.gmra.mrb[0].mxu0 %v951
      %v1087 = vpop.f32.mrb[0].mxu0
      %v1088 = vadd.f32 0.0, %v1087
      %v1089 = vpop.f32.mrb[0].mxu0
      %1090 = vmatprep.mubr.f32.mxu0 %v954
      %1091 = vmatmul.mubr.f32.gmra.mrb[0].mxu0 %v953
      %v1092 = vpop.f32.mrb[0].mxu0
      %v1093 = vadd.f32 0.0, %v1092
      %v1094 = vpop.f32.mrb[0].mxu0
      %1095 = vmatprep.mubr.f32.mxu0 %v956
      %1096 = vmatmul.mubr.f32.gmra.mrb[0].mxu0 %v955
      %v1097 = vpop.f32.mrb[0].mxu0
      %v1098 = vadd.f32 0.0, %v1097
      %v1099 = vpop.f32.mrb[0].mxu0
      %1100 = vmatprep.mubr.f32.mxu0 %v958
      %1101 = vmatmul.mubr.f32.gmra.mrb[0].mxu0 %v957
      %v1102 = vpop.f32.mrb[0].mxu0
      %v1103 = vadd.f32 0.0, %v1102
      %v1104 = vpop.f32.mrb[0].mxu0
      %1105 = vmatprep.mubr.f32.mxu0 %v960
      %1106 = vmatmul.mubr.f32.gmra.mrb[0].mxu0 %v959
      %v1107 = vpop.f32.mrb[0].mxu0
      %v1108 = vadd.f32 0.0, %v1107
      %v1109 = vpop.f32.mrb[0].mxu0
      %1110 = vmatprep.mubr.f32.mxu0 %v962
      %1111 = vmatmul.mubr.f32.gmra.mrb[0].mxu0 %v961
      %v1112 = vpop.f32.mrb[0].mxu0
      %v1113 = vadd.f32 0.0, %v1112
      %v1114 = vpop.f32.mrb[0].mxu0
      %1115 = vmatprep.mubr.f32.mxu0 %v964
      %1116 = vmatmul.mubr.f32.gmra.mrb[0].mxu0 %v963
      %v1117 = vpop.f32.mrb[0].mxu0
      %v1118 = vadd.f32 0.0, %v1117
      %v1119 = vpop.f32.mrb[0].mxu0
      %1120 = vmatprep.mubr.f32.mxu0 %v966
      %1121 = vmatmul.mubr.f32.gmra.mrb[0].mxu0 %v965
      %v1122 = vpop.f32.mrb[0].mxu0
      %v1123 = vadd.f32 0.0, %v1122
      %v1124 = vpop.f32.mrb[0].mxu0
      %1125 = vmatprep.mubr.f32.mxu0 %v968
      %1126 = vmatmul.mubr.f32.gmra.mrb[0].mxu0 %v967
      %v1127 = vpop.f32.mrb[0].mxu0
      %v1128 = vadd.f32 0.0, %v1127
      %v1129 = vpop.f32.mrb[0].mxu0
      %1130 = vmatprep.mubr.f32.mxu0 %v970
      %1131 = vmatmul.mubr.f32.gmra.mrb[0].mxu0 %v969
      %v1132 = vpop.f32.mrb[0].mxu0
      %v1133 = vadd.f32 0.0, %v1132
      %v1134 = vpop.f32.mrb[0].mxu0
      %1135 = vmatprep.mubr.f32.mxu0 %v972
      %1136 = vmatmul.mubr.f32.gmra.mrb[0].mxu0 %v971
      %v1137 = vpop.f32.mrb[0].mxu0
      %v1138 = vadd.f32 0.0, %v1137
      %v1139 = vpop.f32.mrb[0].mxu0
      %1140 = vmatprep.mubr.f32.mxu0 %v974
      %1141 = vmatmul.mubr.f32.gmra.mrb[0].mxu0 %v973
      %v1142 = vpop.f32.mrb[0].mxu0
      %v1143 = vadd.f32 0.0, %v1142
      %v1144 = vpop.f32.mrb[0].mxu0
      %1145 = vmatprep.mubr.f32.mxu0 %v976
      %1146 = vmatmul.mubr.f32.gmra.mrb[0].mxu0 %v975
      %v1147 = vpop.f32.mrb[0].mxu0
      %v1148 = vadd.f32 0.0, %v1147
      %v1149 = vpop.f32.mrb[0].mxu0
      %1150 = vmatprep.mubr.f32.mxu0 %v978
      %1151 = vmatmul.mubr.f32.gmra.mrb[0].mxu0 %v977
      %v1152 = vpop.f32.mrb[0].mxu0
      %v1153 = vadd.f32 0.0, %v1152
      %v1154 = vpop.f32.mrb[0].mxu0
      %1155 = vdwg.mxu0
      %v1156 = vmax.f32 %v1078, 1e-10
      %v1157 = vmax.f32 %v1083, 1e-10
      %v1158 = vmax.f32 %v1088, 1e-10
      %v1159 = vmax.f32 %v1093, 1e-10
      %v1160 = vmax.f32 %v1098, 1e-10
      %v1161 = vmax.f32 %v1103, 1e-10
      %v1162 = vmax.f32 %v1108, 1e-10
      %v1163 = vmax.f32 %v1113, 1e-10
      %v1164 = vmax.f32 %v1118, 1e-10
      %v1165 = vmax.f32 %v1123, 1e-10
      %v1166 = vmax.f32 %v1128, 1e-10
      %v1167 = vmax.f32 %v1133, 1e-10
      %v1168 = vmax.f32 %v1138, 1e-10
      %v1169 = vmax.f32 %v1143, 1e-10
      %v1170 = vmax.f32 %v1148, 1e-10
      %v1171 = vmax.f32 %v1153, 1e-10
      %v1172 = vlog2.pop %v1156
      %v1173 = vmul.f32 %v1172, 0.6931472
      %v1174 = vlog2.pop %v1157
      %v1175 = vmul.f32 %v1174, 0.6931472
      %v1176 = vlog2.pop %v1158
      %v1177 = vmul.f32 %v1176, 0.6931472
      %v1178 = vlog2.pop %v1159
      %v1179 = vmul.f32 %v1178, 0.6931472
      %v1180 = vlog2.pop %v1160
      %v1181 = vmul.f32 %v1180, 0.6931472
      %v1182 = vlog2.pop %v1161
      %v1183 = vmul.f32 %v1182, 0.6931472
      %v1184 = vlog2.pop %v1162
      %v1185 = vmul.f32 %v1184, 0.6931472
      %v1186 = vlog2.pop %v1163
      %v1187 = vmul.f32 %v1186, 0.6931472
      %v1188 = vlog2.pop %v1164
      %v1189 = vmul.f32 %v1188, 0.6931472
      %v1190 = vlog2.pop %v1165
      %v1191 = vmul.f32 %v1190, 0.6931472
      %v1192 = vlog2.pop %v1166
      %v1193 = vmul.f32 %v1192, 0.6931472
      %v1194 = vlog2.pop %v1167
      %v1195 = vmul.f32 %v1194, 0.6931472
      %v1196 = vlog2.pop %v1168
      %v1197 = vmul.f32 %v1196, 0.6931472
      %v1198 = vlog2.pop %v1169
      %v1199 = vmul.f32 %v1198, 0.6931472
      %v1200 = vlog2.pop %v1170
      %v1201 = vmul.f32 %v1200, 0.6931472
      %v1202 = vlog2.pop %v1171
      %v1203 = vmul.f32 %v1202, 0.6931472
      %v1204 = vmul.f32 %v1173, 0.4342945
      %v1205 = vmul.f32 %v1175, 0.4342945
      %v1206 = vmul.f32 %v1177, 0.4342945
      %v1207 = vmul.f32 %v1179, 0.4342945
      %v1208 = vmul.f32 %v1181, 0.4342945
      %v1209 = vmul.f32 %v1183, 0.4342945
      %v1210 = vmul.f32 %v1185, 0.4342945
      %v1211 = vmul.f32 %v1187, 0.4342945
      %v1212 = vmul.f32 %v1189, 0.4342945
      %v1213 = vmul.f32 %v1191, 0.4342945
      %v1214 = vmul.f32 %v1193, 0.4342945
      %v1215 = vmul.f32 %v1195, 0.4342945
      %v1216 = vmul.f32 %v1197, 0.4342945
      %v1217 = vmul.f32 %v1199, 0.4342945
      %v1218 = vmul.f32 %v1201, 0.4342945
      %v1219 = vmul.f32 %v1203, 0.4342945
      %v1220 = vmul.f32 %v1204, 10.0
      %v1221 = vmul.f32 %v1205, 10.0
      %v1222 = vmul.f32 %v1206, 10.0
      %v1223 = vmul.f32 %v1207, 10.0
      %v1224 = vmul.f32 %v1208, 10.0
      %v1225 = vmul.f32 %v1209, 10.0
      %v1226 = vmul.f32 %v1210, 10.0
      %v1227 = vmul.f32 %v1211, 10.0
      %v1228 = vmul.f32 %v1212, 10.0
      %v1229 = vmul.f32 %v1213, 10.0
      %v1230 = vmul.f32 %v1214, 10.0
      %v1231 = vmul.f32 %v1215, 10.0
      %v1232 = vmul.f32 %v1216, 10.0
      %v1233 = vmul.f32 %v1217, 10.0
      %v1234 = vmul.f32 %v1218, 10.0
      %v1235 = vmul.f32 %v1219, 10.0
      %1236 = vst [vmem:[%s175] sm:$0xff] %v1220
      %1237 = vst [vmem:[%s175 + $0x8] sm:$0xff] %v1221
      %1238 = vst [vmem:[%s175 + $0x10] sm:$0xff] %v1222
      %1239 = vst [vmem:[%s175 + $0x18] sm:$0xff] %v1223
      %1240 = vst [vmem:[%s175 + $0x20] sm:$0xff] %v1224
      %1241 = vst [vmem:[%s175 + $0x28] sm:$0xff] %v1225
      %1242 = vst [vmem:[%s175 + $0x30] sm:$0xff] %v1226
      %1243 = vst [vmem:[%s175 + $0x38] sm:$0xff] %v1227
      %1244 = vst [vmem:[%s175 + $0x40] sm:$0xff] %v1228
      %1245 = vst [vmem:[%s175 + $0x48] sm:$0xff] %v1229
      %1246 = vst [vmem:[%s175 + $0x50] sm:$0xff] %v1230
      %1247 = vst [vmem:[%s175 + $0x58] sm:$0xff] %v1231
      %1248 = vst [vmem:[%s175 + $0x60] sm:$0xff] %v1232
      %1249 = vst [vmem:[%s175 + $0x68] sm:$0xff] %v1233
      %1250 = vst [vmem:[%s175 + $0x70] sm:$0xff] %v1234
      %1251 = vst [vmem:[%s175 + $0x78] sm:$0xff] %v1235
      %s1252 = smul.u32 16, %s14
      %p1253 = scmp.lt.s32.totalorder %s1252, 31
      %s1254 = scalar_select %p1253, %s1252, 31
      %s1255 = smul.addr %s1254, 8
      %s1256 = scalar_lea.vmem %s3, %s1255
      // Predicated region
      $region33: #{mfcc_mean.1} parent=31 // pred_check
        %p1257 = pneg %p100
      $region34: #{mfcc_mean.1} parent=31 // pred_check_branch
        %1259 = sbr.rel (%p1257) target = $region36
      $region35: #{mfcc_mean.1} parent=31 // pred_region
        %s1260 = smul.u32 16, %s14
      $region36: #{mfcc_mean.1} parent=31 // pred_fallthru
        _
    $region32: #{mfcc_mean.1} parent=5 // pred_fallthru
      _
    %p1261 = scmp.le.s32.totalorder 2, %s9
    // Predicated region
    $region37: #{mfcc_mean.1} parent=5 // pred_check
      %p1262 = pneg %p1261
    $region38: #{mfcc_mean.1} parent=5 // pred_check_branch
      %1264 = sbr.rel (%p1262) target = $region40
    $region39: #{mfcc_mean.1} parent=5 // pred_region
      %s1265 = ssub.s32 %s9, 2
      // Predicated region
      $region41: #{mfcc_mean.1} parent=39 // pred_check
        %p1266 = pneg %p106
      $region42: #{mfcc_mean.1} parent=39 // pred_check_branch
        %1268 = sbr.rel (%p1266) target = $region44
      $region43: #{mfcc_mean.1} parent=39 // pred_region
        %s1269 = smul.u32 16, %s15
        %p1270 = scmp.lt.s32.totalorder %s1269, 31
        %s1271 = scalar_select %p1270, %s1269, 31
        %s1272 = smul.addr %s1271, 8
        %s1273 = scalar_lea.vmem %s3, %s1272
      $region44: #{mfcc_mean.1} parent=39 // pred_fallthru
        _
    $region40: #{mfcc_mean.1} parent=5 // pred_fallthru
      _
  $region6: #{mfcc_mean.1} parent=0 // loop_footer
    %s13 = sadd.s32 1, %s9
  $region7: #{mfcc_mean.1} parent=0 // loop_footer_branch
    %8 = sbr.rel target = $region3
  $region8: #{mfcc_mean.1} parent=0 // loop_exit
    _

</llo_original>
